<compile_context>
chip_gen: v7x
topology: tpu7x:2x2x1
jax: 0.10.0
libtpu: 0.0.40
codegen_flags: <defaults>
</compile_context>

<pallas_src>
import jax
import jax.numpy as jnp
from jax.experimental import pallas as pl
from jax.experimental.pallas import tpu as pltpu

_LANE = 512        # lane-dense last dim (multiple of 128 -> full-width unmasked stores)
_TILE_ROWS = 256   # rows per grid step: 256*512*4 B = 512 KiB/buffer (double-buffered in+out ~2 MiB)


def _perceptron_kernel(w_ref, b_ref, x_ref, o_ref):
    # w_ref, b_ref: (1,) f32 scalars in SMEM.
    # x_ref, o_ref: (TILE_ROWS, LANE) f32 tiles in VMEM.
    w = w_ref[0]
    b = b_ref[0]
    z = x_ref[...] * w + b          # nn.Linear(1, 1): x @ W^T + b collapses to scale + shift
    o_ref[...] = jax.nn.sigmoid(z)  # torch.sigmoid (exp on EUP, rest on VPU)


def simple_perceptron_forward(x, weight, bias, *, tile_rows=_TILE_ROWS, lane=_LANE):
    """x: (B, 1) f32, weight: (1, 1) f32, bias: (1,) f32 -> (B, 1) f32."""
    B, in_features = x.shape
    assert in_features == 1 and weight.shape == (1, 1) and bias.shape == (1,)

    # ---- lane-dense layout plumbing (pure reshape/pad, no math) ----
    flat = x.reshape(-1)                            # (B,)
    tile_elems = tile_rows * lane
    n_pad = pl.cdiv(B, tile_elems) * tile_elems     # pad so every grid block is full
    flat = jnp.pad(flat, (0, n_pad - B))
    x2d = flat.reshape(n_pad // lane, lane)         # (rows, lane) lane-dense slab
    rows = x2d.shape[0]

    w_s = weight.reshape(-1)                        # (1,) -> SMEM scalar
    b_s = bias.reshape(-1)                          # (1,) -> SMEM scalar

    out2d = pl.pallas_call(
        _perceptron_kernel,
        out_shape=jax.ShapeDtypeStruct((rows, lane), x.dtype),
        grid=(rows // tile_rows,),
        in_specs=[
            pl.BlockSpec(memory_space=pltpu.MemorySpace.SMEM),    # weight scalar (no DMA stream)
            pl.BlockSpec(memory_space=pltpu.MemorySpace.SMEM),    # bias scalar   (no DMA stream)
            pl.BlockSpec((tile_rows, lane), lambda i: (i, 0)),    # batch tile, auto double-buffered
        ],
        out_specs=pl.BlockSpec((tile_rows, lane), lambda i: (i, 0)),
        compiler_params=pltpu.CompilerParams(
            dimension_semantics=("parallel",),      # shard batch tiles across v7x's 2 TCs
        ),
    )(w_s, b_s, x2d)

    # Slice off the pad region and restore the (B, 1) PyTorch layout.
    return out2d.reshape(-1)[:B].reshape(B, 1)


if __name__ == "__main__":
    key = jax.random.PRNGKey(0)
    kx, kw, kb = jax.random.split(key, 3)

    batch = 8
    # Deterministic parameter init (matches nn.Linear(1, 1) shapes).
    weight = jax.random.uniform(kw, (1, 1), jnp.float32, minval=-1.0, maxval=1.0)
    bias = jax.random.uniform(kb, (1,), jnp.float32, minval=-1.0, maxval=1.0)

    x = jax.random.normal(kx, (batch, 1), jnp.float32)

    out = simple_perceptron_forward(x, weight, bias)
    out = jax.block_until_ready(out)

    # Reference check in plain JAX (same math as torch.sigmoid(fc(x))).
    ref = jax.nn.sigmoid(x @ weight.T + bias)
    assert out.shape == (batch, 1)
    assert jnp.allclose(out, ref, atol=1e-6), "mismatch vs reference"

    print("KERNEL_OK")
</pallas_src>

<mosaic_0001>
module attributes {stable_mosaic.version = 11 : i64} {
  func.func @_perceptron_kernel(%arg0: i32, %arg1: memref<1xf32, #tpu.memory_space<smem>>, %arg2: memref<1xf32, #tpu.memory_space<smem>>, %arg3: memref<256x512xf32, #tpu.memory_space<vmem>>, %arg4: memref<256x512xf32, #tpu.memory_space<vmem>>) attributes {dimension_semantics = [#tpu.dimension_semantics<parallel>], iteration_bounds = array<i64: 1>, scalar_prefetch = 0 : i64, scratch_operands = 0 : i64, tpu.core_type = #tpu.core_type<tc>, window_params = [{transform_indices = @transform_0, window_bounds = array<i64: 1>}, {transform_indices = @transform_1, window_bounds = array<i64: 1>}, {transform_indices = @transform_2, window_bounds = array<i64: 256, 512>}, {transform_indices = @transform_3, window_bounds = array<i64: 256, 512>}]} {
    %c0 = arith.constant 0 : index
    %0 = memref.load %arg1[%c0] : memref<1xf32, #tpu.memory_space<smem>>
    %c0_0 = arith.constant 0 : index
    %1 = memref.load %arg2[%c0_0] : memref<1xf32, #tpu.memory_space<smem>>
    %c0_1 = arith.constant 0 : index
    %c0_2 = arith.constant 0 : index
    %2 = vector.load %arg3[%c0_1, %c0_2] : memref<256x512xf32, #tpu.memory_space<vmem>>, vector<256x512xf32>
    %3 = vector.broadcast %0 : f32 to vector<256x512xf32>
    %4 = arith.mulf %2, %3 : vector<256x512xf32>
    %5 = vector.broadcast %1 : f32 to vector<256x512xf32>
    %6 = arith.addf %4, %5 : vector<256x512xf32>
    %7 = arith.negf %6 : vector<256x512xf32>
    %8 = math.exp %7 : vector<256x512xf32>
    %cst = arith.constant 1.000000e+00 : f32
    %9 = vector.broadcast %cst : f32 to vector<256x512xf32>
    %10 = arith.addf %9, %8 : vector<256x512xf32>
    %11 = arith.divf %9, %10 : vector<256x512xf32>
    %c0_3 = arith.constant 0 : index
    %c0_4 = arith.constant 0 : index
    %12 = vector.load %arg4[%c0_3, %c0_4] : memref<256x512xf32, #tpu.memory_space<vmem>>, vector<256x512xf32>
    tpu.vector_store %arg4[%c0_3, %c0_4], %11 {strides = array<i32>} : memref<256x512xf32, #tpu.memory_space<vmem>>, vector<256x512xf32>,
    return
  }
  func.func @transform_0(%arg0: i32) -> i32 {
    %c0_i32 = arith.constant 0 : i32
    %c0_i32_0 = arith.constant 0 : i32
    return %c0_i32 : i32
  }
  func.func @transform_1(%arg0: i32) -> i32 {
    %c0_i32 = arith.constant 0 : i32
    %c0_i32_0 = arith.constant 0 : i32
    return %c0_i32 : i32
  }
  func.func @transform_2(%arg0: i32) -> (i32, i32) {
    %c0_i32 = arith.constant 0 : i32
    %c0_i32_0 = arith.constant 0 : i32
    return %arg0, %c0_i32 : i32, i32
  }
  func.func @transform_3(%arg0: i32) -> (i32, i32) {
    %c0_i32 = arith.constant 0 : i32
    %c0_i32_0 = arith.constant 0 : i32
    return %arg0, %c0_i32 : i32, i32
  }
}

</mosaic_0001>

<llo_original>
// kernel: tpu_custom_call.1
$region0: #{tpu_custom_call.1}
  #allocation0 [shape = 'u32[]', space=smem, size = 0x4, offset = 0x4, fixed_abs, tag = 'smem constant byte address 0x4 - core index']
  #allocation1 [shape = 'u32[144,128]{1,0:T(1,128)}', space=vmem, size = 0x12000, scoped, tag = 'internal scratch']
  #allocation2 [shape = 'f32[1]{0:T(128)S(6)}', space=smem, size = 0x200, scoped, tag = 'scoped memory for tpu_custom_call.1']
  #allocation3 [shape = 'f32[1]{0:T(128)S(6)}', space=smem, size = 0x200, scoped, tag = 'scoped memory for tpu_custom_call.1']
  %s0 = inlined_call_operand.<no memory space> [shape: f32[1], index: 0, kind: input, shape index: {}]
  %s1 = inlined_call_operand.<no memory space> [shape: f32[1], index: 1, kind: input, shape index: {}]
  %s2 = inlined_call_operand.hbm [shape: f32[256,512], index: 2, kind: input, shape index: {}]
  %s3 = inlined_call_operand.hbm [shape: f32[256,512], index: 3, kind: output, shape index: {}]
  %s4 = sld [smem:[#allocation0]]
  $region26: #{tpu_custom_call.1} parent=0
    _
  %s6 = ssub.s32 1, %s4
  %s7 = scalar_select 0, %s6, %s4
  %8 = sst [smem:[#allocation2]] %s0
  %9 = sst [smem:[#allocation3]] %s1
  $region1: #{tpu_custom_call.1} parent=0
    #allocation4 [shape = 'u8[524288]{0}', space=vmem, size = 0x80000, scoped, tag = 'input window, operand 2, single buffered']
    #allocation5 [shape = 's32[1]{0}', space=sflag, size = 0x4, scoped, tag = 'scoped memory for tpu_custom_call.1']
    #allocation6 [shape = 's32[1]{0}', space=sflag, size = 0x4, scoped, tag = 'scoped memory for tpu_custom_call.1']
    #allocation7 [shape = 'u8[524288]{0}', space=vmem, size = 0x80000, scoped, tag = 'output window, operand 0, single buffered']
    %10 = vsyncpa [#allocation5], 0
    %11 = vsyncpa [#allocation6], 0
    // Predicated region
    $region2: #{tpu_custom_call.1} parent=1 // pred_check
      _
    $region3: #{tpu_custom_call.1} parent=1 // pred_check_branch
      %13 = sbr.rel (0) target = $region5
    $region4: #{tpu_custom_call.1} parent=1 // pred_region
      _
    $region5: #{tpu_custom_call.1} parent=1 // pred_fallthru
      _
    // Predicated region
    $region6: #{tpu_custom_call.1} parent=1 // pred_check
      _
    $region7: #{tpu_custom_call.1} parent=1 // pred_check_branch
      %15 = sbr.rel (0) target = $region9
    $region8: #{tpu_custom_call.1} parent=1 // pred_region
      _
    $region9: #{tpu_custom_call.1} parent=1 // pred_fallthru
      _
    // Predicated region
    $region10: #{tpu_custom_call.1} parent=1 // pred_check
      _
    $region11: #{tpu_custom_call.1} parent=1 // pred_check_branch
      %17 = sbr.rel (0) target = $region13
    $region12: #{tpu_custom_call.1} parent=1 // pred_region
      %s19 = ssub.s32 16384, 16384
      %20 = vsyncadd [#allocation5], %s19
      %s21 = sshll.u32 [#allocation4], 4
      %s22 = int_to_ptr.vmem [resolvable:$true] %s21
      %27 = dma.hbm_to_vmem [thread:$0]  %s2, 16384, %s22, [#allocation5], 512, 512, 32
    $region13: #{tpu_custom_call.1} parent=1 // pred_fallthru
      _
    // Predicated region
    $region14: #{tpu_custom_call.1} parent=1 // pred_check
      _
    $region15: #{tpu_custom_call.1} parent=1 // pred_check_branch
      %29 = sbr.rel (0) target = $region17
    $region16: #{tpu_custom_call.1} parent=1 // pred_region
      %30 = dma.done [#allocation5], 16384
    $region17: #{tpu_custom_call.1} parent=1 // pred_fallthru
      _
    %s31 = sld [smem:[#allocation2]]
    %s32 = sld [smem:[#allocation3]]
    %v33 = vld [vmem:[#allocation4] sm:$0xff]
    %v34 = vld [vmem:[#allocation4 + $0x8] sm:$0xff]
    %v35 = vld [vmem:[#allocation4 + $0x10] sm:$0xff]
    %v36 = vld [vmem:[#allocation4 + $0x18] sm:$0xff]
    %v37 = vld [vmem:[#allocation4 + $0x20] sm:$0xff]
    %v38 = vld [vmem:[#allocation4 + $0x28] sm:$0xff]
    %v39 = vld [vmem:[#allocation4 + $0x30] sm:$0xff]
    %v40 = vld [vmem:[#allocation4 + $0x38] sm:$0xff]
    %v41 = vld [vmem:[#allocation4 + $0x40] sm:$0xff]
    %v42 = vld [vmem:[#allocation4 + $0x48] sm:$0xff]
    %v43 = vld [vmem:[#allocation4 + $0x50] sm:$0xff]
    %v44 = vld [vmem:[#allocation4 + $0x58] sm:$0xff]
    %v45 = vld [vmem:[#allocation4 + $0x60] sm:$0xff]
    %v46 = vld [vmem:[#allocation4 + $0x68] sm:$0xff]
    %v47 = vld [vmem:[#allocation4 + $0x70] sm:$0xff]
    %v48 = vld [vmem:[#allocation4 + $0x78] sm:$0xff]
    %v49 = vld [vmem:[#allocation4 + $0x80] sm:$0xff]
    %v50 = vld [vmem:[#allocation4 + $0x88] sm:$0xff]
    %v51 = vld [vmem:[#allocation4 + $0x90] sm:$0xff]
    %v52 = vld [vmem:[#allocation4 + $0x98] sm:$0xff]
    %v53 = vld [vmem:[#allocation4 + $0xa0] sm:$0xff]
    %v54 = vld [vmem:[#allocation4 + $0xa8] sm:$0xff]
    %v55 = vld [vmem:[#allocation4 + $0xb0] sm:$0xff]
    %v56 = vld [vmem:[#allocation4 + $0xb8] sm:$0xff]
    %v57 = vld [vmem:[#allocation4 + $0xc0] sm:$0xff]
    %v58 = vld [vmem:[#allocation4 + $0xc8] sm:$0xff]
    %v59 = vld [vmem:[#allocation4 + $0xd0] sm:$0xff]
    %v60 = vld [vmem:[#allocation4 + $0xd8] sm:$0xff]
    %v61 = vld [vmem:[#allocation4 + $0xe0] sm:$0xff]
    %v62 = vld [vmem:[#allocation4 + $0xe8] sm:$0xff]
    %v63 = vld [vmem:[#allocation4 + $0xf0] sm:$0xff]
    %v64 = vld [vmem:[#allocation4 + $0xf8] sm:$0xff]
    %v65 = vld [vmem:[#allocation4 + $0x100] sm:$0xff]
    %v66 = vld [vmem:[#allocation4 + $0x108] sm:$0xff]
    %v67 = vld [vmem:[#allocation4 + $0x110] sm:$0xff]
    %v68 = vld [vmem:[#allocation4 + $0x118] sm:$0xff]
    %v69 = vld [vmem:[#allocation4 + $0x120] sm:$0xff]
    %v70 = vld [vmem:[#allocation4 + $0x128] sm:$0xff]
    %v71 = vld [vmem:[#allocation4 + $0x130] sm:$0xff]
    %v72 = vld [vmem:[#allocation4 + $0x138] sm:$0xff]
    %v73 = vld [vmem:[#allocation4 + $0x140] sm:$0xff]
    %v74 = vld [vmem:[#allocation4 + $0x148] sm:$0xff]
    %v75 = vld [vmem:[#allocation4 + $0x150] sm:$0xff]
    %v76 = vld [vmem:[#allocation4 + $0x158] sm:$0xff]
    %v77 = vld [vmem:[#allocation4 + $0x160] sm:$0xff]
    %v78 = vld [vmem:[#allocation4 + $0x168] sm:$0xff]
    %v79 = vld [vmem:[#allocation4 + $0x170] sm:$0xff]
    %v80 = vld [vmem:[#allocation4 + $0x178] sm:$0xff]
    %v81 = vld [vmem:[#allocation4 + $0x180] sm:$0xff]
    %v82 = vld [vmem:[#allocation4 + $0x188] sm:$0xff]
    %v83 = vld [vmem:[#allocation4 + $0x190] sm:$0xff]
    %v84 = vld [vmem:[#allocation4 + $0x198] sm:$0xff]
    %v85 = vld [vmem:[#allocation4 + $0x1a0] sm:$0xff]
    %v86 = vld [vmem:[#allocation4 + $0x1a8] sm:$0xff]
    %v87 = vld [vmem:[#allocation4 + $0x1b0] sm:$0xff]
    %v88 = vld [vmem:[#allocation4 + $0x1b8] sm:$0xff]
    %v89 = vld [vmem:[#allocation4 + $0x1c0] sm:$0xff]
    %v90 = vld [vmem:[#allocation4 + $0x1c8] sm:$0xff]
    %v91 = vld [vmem:[#allocation4 + $0x1d0] sm:$0xff]
    %v92 = vld [vmem:[#allocation4 + $0x1d8] sm:$0xff]
    %v93 = vld [vmem:[#allocation4 + $0x1e0] sm:$0xff]
    %v94 = vld [vmem:[#allocation4 + $0x1e8] sm:$0xff]
    %v95 = vld [vmem:[#allocation4 + $0x1f0] sm:$0xff]
    %v96 = vld [vmem:[#allocation4 + $0x1f8] sm:$0xff]
    %v97 = vld [vmem:[#allocation4 + $0x200] sm:$0xff]
    %v98 = vld [vmem:[#allocation4 + $0x208] sm:$0xff]
    %v99 = vld [vmem:[#allocation4 + $0x210] sm:$0xff]
    %v100 = vld [vmem:[#allocation4 + $0x218] sm:$0xff]
    %v101 = vld [vmem:[#allocation4 + $0x220] sm:$0xff]
    %v102 = vld [vmem:[#allocation4 + $0x228] sm:$0xff]
    %v103 = vld [vmem:[#allocation4 + $0x230] sm:$0xff]
    %v104 = vld [vmem:[#allocation4 + $0x238] sm:$0xff]
    %v105 = vld [vmem:[#allocation4 + $0x240] sm:$0xff]
    %v106 = vld [vmem:[#allocation4 + $0x248] sm:$0xff]
    %v107 = vld [vmem:[#allocation4 + $0x250] sm:$0xff]
    %v108 = vld [vmem:[#allocation4 + $0x258] sm:$0xff]
    %v109 = vld [vmem:[#allocation4 + $0x260] sm:$0xff]
    %v110 = vld [vmem:[#allocation4 + $0x268] sm:$0xff]
    %v111 = vld [vmem:[#allocation4 + $0x270] sm:$0xff]
    %v112 = vld [vmem:[#allocation4 + $0x278] sm:$0xff]
    %v113 = vld [vmem:[#allocation4 + $0x280] sm:$0xff]
    %v114 = vld [vmem:[#allocation4 + $0x288] sm:$0xff]
    %v115 = vld [vmem:[#allocation4 + $0x290] sm:$0xff]
    %v116 = vld [vmem:[#allocation4 + $0x298] sm:$0xff]
    %v117 = vld [vmem:[#allocation4 + $0x2a0] sm:$0xff]
    %v118 = vld [vmem:[#allocation4 + $0x2a8] sm:$0xff]
    %v119 = vld [vmem:[#allocation4 + $0x2b0] sm:$0xff]
    %v120 = vld [vmem:[#allocation4 + $0x2b8] sm:$0xff]
    %v121 = vld [vmem:[#allocation4 + $0x2c0] sm:$0xff]
    %v122 = vld [vmem:[#allocation4 + $0x2c8] sm:$0xff]
    %v123 = vld [vmem:[#allocation4 + $0x2d0] sm:$0xff]
    %v124 = vld [vmem:[#allocation4 + $0x2d8] sm:$0xff]
    %v125 = vld [vmem:[#allocation4 + $0x2e0] sm:$0xff]
    %v126 = vld [vmem:[#allocation4 + $0x2e8] sm:$0xff]
    %v127 = vld [vmem:[#allocation4 + $0x2f0] sm:$0xff]
    %v128 = vld [vmem:[#allocation4 + $0x2f8] sm:$0xff]
    %v129 = vld [vmem:[#allocation4 + $0x300] sm:$0xff]
    %v130 = vld [vmem:[#allocation4 + $0x308] sm:$0xff]
    %v131 = vld [vmem:[#allocation4 + $0x310] sm:$0xff]
    %v132 = vld [vmem:[#allocation4 + $0x318] sm:$0xff]
    %v133 = vld [vmem:[#allocation4 + $0x320] sm:$0xff]
    %v134 = vld [vmem:[#allocation4 + $0x328] sm:$0xff]
    %v135 = vld [vmem:[#allocation4 + $0x330] sm:$0xff]
    %v136 = vld [vmem:[#allocation4 + $0x338] sm:$0xff]
    %v137 = vld [vmem:[#allocation4 + $0x340] sm:$0xff]
    %v138 = vld [vmem:[#allocation4 + $0x348] sm:$0xff]
    %v139 = vld [vmem:[#allocation4 + $0x350] sm:$0xff]
    %v140 = vld [vmem:[#allocation4 + $0x358] sm:$0xff]
    %v141 = vld [vmem:[#allocation4 + $0x360] sm:$0xff]
    %v142 = vld [vmem:[#allocation4 + $0x368] sm:$0xff]
    %v143 = vld [vmem:[#allocation4 + $0x370] sm:$0xff]
    %v144 = vld [vmem:[#allocation4 + $0x378] sm:$0xff]
    %v145 = vld [vmem:[#allocation4 + $0x380] sm:$0xff]
    %v146 = vld [vmem:[#allocation4 + $0x388] sm:$0xff]
    %v147 = vld [vmem:[#allocation4 + $0x390] sm:$0xff]
    %v148 = vld [vmem:[#allocation4 + $0x398] sm:$0xff]
    %v149 = vld [vmem:[#allocation4 + $0x3a0] sm:$0xff]
    %v150 = vld [vmem:[#allocation4 + $0x3a8] sm:$0xff]
    %v151 = vld [vmem:[#allocation4 + $0x3b0] sm:$0xff]
    %v152 = vld [vmem:[#allocation4 + $0x3b8] sm:$0xff]
    %v153 = vld [vmem:[#allocation4 + $0x3c0] sm:$0xff]
    %v154 = vld [vmem:[#allocation4 + $0x3c8] sm:$0xff]
    %v155 = vld [vmem:[#allocation4 + $0x3d0] sm:$0xff]
    %v156 = vld [vmem:[#allocation4 + $0x3d8] sm:$0xff]
    %v157 = vld [vmem:[#allocation4 + $0x3e0] sm:$0xff]
    %v158 = vld [vmem:[#allocation4 + $0x3e8] sm:$0xff]
    %v159 = vld [vmem:[#allocation4 + $0x3f0] sm:$0xff]
    %v160 = vld [vmem:[#allocation4 + $0x3f8] sm:$0xff]
    %v161 = vstv %s31
    %v162 = vmul.f32 %v33, %v161
    %v163 = vmul.f32 %v34, %v161
    %v164 = vmul.f32 %v35, %v161
    %v165 = vmul.f32 %v36, %v161
    %v166 = vmul.f32 %v37, %v161
    %v167 = vmul.f32 %v38, %v161
    %v168 = vmul.f32 %v39, %v161
    %v169 = vmul.f32 %v40, %v161
    %v170 = vmul.f32 %v41, %v161
    %v171 = vmul.f32 %v42, %v161
    %v172 = vmul.f32 %v43, %v161
    %v173 = vmul.f32 %v44, %v161
    %v174 = vmul.f32 %v45, %v161
    %v175 = vmul.f32 %v46, %v161
    %v176 = vmul.f32 %v47, %v161
    %v177 = vmul.f32 %v48, %v161
    %v178 = vmul.f32 %v49, %v161
    %v179 = vmul.f32 %v50, %v161
    %v180 = vmul.f32 %v51, %v161
    %v181 = vmul.f32 %v52, %v161
    %v182 = vmul.f32 %v53, %v161
    %v183 = vmul.f32 %v54, %v161
    %v184 = vmul.f32 %v55, %v161
    %v185 = vmul.f32 %v56, %v161
    %v186 = vmul.f32 %v57, %v161
    %v187 = vmul.f32 %v58, %v161
    %v188 = vmul.f32 %v59, %v161
    %v189 = vmul.f32 %v60, %v161
    %v190 = vmul.f32 %v61, %v161
    %v191 = vmul.f32 %v62, %v161
    %v192 = vmul.f32 %v63, %v161
    %v193 = vmul.f32 %v64, %v161
    %v194 = vmul.f32 %v65, %v161
    %v195 = vmul.f32 %v66, %v161
    %v196 = vmul.f32 %v67, %v161
    %v197 = vmul.f32 %v68, %v161
    %v198 = vmul.f32 %v69, %v161
    %v199 = vmul.f32 %v70, %v161
    %v200 = vmul.f32 %v71, %v161
    %v201 = vmul.f32 %v72, %v161
    %v202 = vmul.f32 %v73, %v161
    %v203 = vmul.f32 %v74, %v161
    %v204 = vmul.f32 %v75, %v161
    %v205 = vmul.f32 %v76, %v161
    %v206 = vmul.f32 %v77, %v161
    %v207 = vmul.f32 %v78, %v161
    %v208 = vmul.f32 %v79, %v161
    %v209 = vmul.f32 %v80, %v161
    %v210 = vmul.f32 %v81, %v161
    %v211 = vmul.f32 %v82, %v161
    %v212 = vmul.f32 %v83, %v161
    %v213 = vmul.f32 %v84, %v161
    %v214 = vmul.f32 %v85, %v161
    %v215 = vmul.f32 %v86, %v161
    %v216 = vmul.f32 %v87, %v161
    %v217 = vmul.f32 %v88, %v161
    %v218 = vmul.f32 %v89, %v161
    %v219 = vmul.f32 %v90, %v161
    %v220 = vmul.f32 %v91, %v161
    %v221 = vmul.f32 %v92, %v161
    %v222 = vmul.f32 %v93, %v161
    %v223 = vmul.f32 %v94, %v161
    %v224 = vmul.f32 %v95, %v161
    %v225 = vmul.f32 %v96, %v161
    %v226 = vmul.f32 %v97, %v161
    %v227 = vmul.f32 %v98, %v161
    %v228 = vmul.f32 %v99, %v161
    %v229 = vmul.f32 %v100, %v161
    %v230 = vmul.f32 %v101, %v161
    %v231 = vmul.f32 %v102, %v161
    %v232 = vmul.f32 %v103, %v161
    %v233 = vmul.f32 %v104, %v161
    %v234 = vmul.f32 %v105, %v161
    %v235 = vmul.f32 %v106, %v161
    %v236 = vmul.f32 %v107, %v161
    %v237 = vmul.f32 %v108, %v161
    %v238 = vmul.f32 %v109, %v161
    %v239 = vmul.f32 %v110, %v161
    %v240 = vmul.f32 %v111, %v161
    %v241 = vmul.f32 %v112, %v161
    %v242 = vmul.f32 %v113, %v161
    %v243 = vmul.f32 %v114, %v161
    %v244 = vmul.f32 %v115, %v161
    %v245 = vmul.f32 %v116, %v161
    %v246 = vmul.f32 %v117, %v161
    %v247 = vmul.f32 %v118, %v161
    %v248 = vmul.f32 %v119, %v161
    %v249 = vmul.f32 %v120, %v161
    %v250 = vmul.f32 %v121, %v161
    %v251 = vmul.f32 %v122, %v161
    %v252 = vmul.f32 %v123, %v161
    %v253 = vmul.f32 %v124, %v161
    %v254 = vmul.f32 %v125, %v161
    %v255 = vmul.f32 %v126, %v161
    %v256 = vmul.f32 %v127, %v161
    %v257 = vmul.f32 %v128, %v161
    %v258 = vmul.f32 %v129, %v161
    %v259 = vmul.f32 %v130, %v161
    %v260 = vmul.f32 %v131, %v161
    %v261 = vmul.f32 %v132, %v161
    %v262 = vmul.f32 %v133, %v161
    %v263 = vmul.f32 %v134, %v161
    %v264 = vmul.f32 %v135, %v161
    %v265 = vmul.f32 %v136, %v161
    %v266 = vmul.f32 %v137, %v161
    %v267 = vmul.f32 %v138, %v161
    %v268 = vmul.f32 %v139, %v161
    %v269 = vmul.f32 %v140, %v161
    %v270 = vmul.f32 %v141, %v161
    %v271 = vmul.f32 %v142, %v161
    %v272 = vmul.f32 %v143, %v161
    %v273 = vmul.f32 %v144, %v161
    %v274 = vmul.f32 %v145, %v161
    %v275 = vmul.f32 %v146, %v161
    %v276 = vmul.f32 %v147, %v161
    %v277 = vmul.f32 %v148, %v161
    %v278 = vmul.f32 %v149, %v161
    %v279 = vmul.f32 %v150, %v161
    %v280 = vmul.f32 %v151, %v161
    %v281 = vmul.f32 %v152, %v161
    %v282 = vmul.f32 %v153, %v161
    %v283 = vmul.f32 %v154, %v161
    %v284 = vmul.f32 %v155, %v161
    %v285 = vmul.f32 %v156, %v161
    %v286 = vmul.f32 %v157, %v161
    %v287 = vmul.f32 %v158, %v161
    %v288 = vmul.f32 %v159, %v161
    %v289 = vmul.f32 %v160, %v161
    %v290 = vstv %s32
    %v291 = vadd.f32 %v162, %v290
    %v292 = vadd.f32 %v163, %v290
    %v293 = vadd.f32 %v164, %v290
    %v294 = vadd.f32 %v165, %v290
    %v295 = vadd.f32 %v166, %v290
    %v296 = vadd.f32 %v167, %v290
    %v297 = vadd.f32 %v168, %v290
    %v298 = vadd.f32 %v169, %v290
    %v299 = vadd.f32 %v170, %v290
    %v300 = vadd.f32 %v171, %v290
    %v301 = vadd.f32 %v172, %v290
    %v302 = vadd.f32 %v173, %v290
    %v303 = vadd.f32 %v174, %v290
    %v304 = vadd.f32 %v175, %v290
    %v305 = vadd.f32 %v176, %v290
    %v306 = vadd.f32 %v177, %v290
    %v307 = vadd.f32 %v178, %v290
    %v308 = vadd.f32 %v179, %v290
    %v309 = vadd.f32 %v180, %v290
    %v310 = vadd.f32 %v181, %v290
    %v311 = vadd.f32 %v182, %v290
    %v312 = vadd.f32 %v183, %v290
    %v313 = vadd.f32 %v184, %v290
    %v314 = vadd.f32 %v185, %v290
    %v315 = vadd.f32 %v186, %v290
    %v316 = vadd.f32 %v187, %v290
    %v317 = vadd.f32 %v188, %v290
    %v318 = vadd.f32 %v189, %v290
    %v319 = vadd.f32 %v190, %v290
    %v320 = vadd.f32 %v191, %v290
    %v321 = vadd.f32 %v192, %v290
    %v322 = vadd.f32 %v193, %v290
    %v323 = vadd.f32 %v194, %v290
    %v324 = vadd.f32 %v195, %v290
    %v325 = vadd.f32 %v196, %v290
    %v326 = vadd.f32 %v197, %v290
    %v327 = vadd.f32 %v198, %v290
    %v328 = vadd.f32 %v199, %v290
    %v329 = vadd.f32 %v200, %v290
    %v330 = vadd.f32 %v201, %v290
    %v331 = vadd.f32 %v202, %v290
    %v332 = vadd.f32 %v203, %v290
    %v333 = vadd.f32 %v204, %v290
    %v334 = vadd.f32 %v205, %v290
    %v335 = vadd.f32 %v206, %v290
    %v336 = vadd.f32 %v207, %v290
    %v337 = vadd.f32 %v208, %v290
    %v338 = vadd.f32 %v209, %v290
    %v339 = vadd.f32 %v210, %v290
    %v340 = vadd.f32 %v211, %v290
    %v341 = vadd.f32 %v212, %v290
    %v342 = vadd.f32 %v213, %v290
    %v343 = vadd.f32 %v214, %v290
    %v344 = vadd.f32 %v215, %v290
    %v345 = vadd.f32 %v216, %v290
    %v346 = vadd.f32 %v217, %v290
    %v347 = vadd.f32 %v218, %v290
    %v348 = vadd.f32 %v219, %v290
    %v349 = vadd.f32 %v220, %v290
    %v350 = vadd.f32 %v221, %v290
    %v351 = vadd.f32 %v222, %v290
    %v352 = vadd.f32 %v223, %v290
    %v353 = vadd.f32 %v224, %v290
    %v354 = vadd.f32 %v225, %v290
    %v355 = vadd.f32 %v226, %v290
    %v356 = vadd.f32 %v227, %v290
    %v357 = vadd.f32 %v228, %v290
    %v358 = vadd.f32 %v229, %v290
    %v359 = vadd.f32 %v230, %v290
    %v360 = vadd.f32 %v231, %v290
    %v361 = vadd.f32 %v232, %v290
    %v362 = vadd.f32 %v233, %v290
    %v363 = vadd.f32 %v234, %v290
    %v364 = vadd.f32 %v235, %v290
    %v365 = vadd.f32 %v236, %v290
    %v366 = vadd.f32 %v237, %v290
    %v367 = vadd.f32 %v238, %v290
    %v368 = vadd.f32 %v239, %v290
    %v369 = vadd.f32 %v240, %v290
    %v370 = vadd.f32 %v241, %v290
    %v371 = vadd.f32 %v242, %v290
    %v372 = vadd.f32 %v243, %v290
    %v373 = vadd.f32 %v244, %v290
    %v374 = vadd.f32 %v245, %v290
    %v375 = vadd.f32 %v246, %v290
    %v376 = vadd.f32 %v247, %v290
    %v377 = vadd.f32 %v248, %v290
    %v378 = vadd.f32 %v249, %v290
    %v379 = vadd.f32 %v250, %v290
    %v380 = vadd.f32 %v251, %v290
    %v381 = vadd.f32 %v252, %v290
    %v382 = vadd.f32 %v253, %v290
    %v383 = vadd.f32 %v254, %v290
    %v384 = vadd.f32 %v255, %v290
    %v385 = vadd.f32 %v256, %v290
    %v386 = vadd.f32 %v257, %v290
    %v387 = vadd.f32 %v258, %v290
    %v388 = vadd.f32 %v259, %v290
    %v389 = vadd.f32 %v260, %v290
    %v390 = vadd.f32 %v261, %v290
    %v391 = vadd.f32 %v262, %v290
    %v392 = vadd.f32 %v263, %v290
    %v393 = vadd.f32 %v264, %v290
    %v394 = vadd.f32 %v265, %v290
    %v395 = vadd.f32 %v266, %v290
    %v396 = vadd.f32 %v267, %v290
    %v397 = vadd.f32 %v268, %v290
    %v398 = vadd.f32 %v269, %v290
    %v399 = vadd.f32 %v270, %v290
    %v400 = vadd.f32 %v271, %v290
    %v401 = vadd.f32 %v272, %v290
    %v402 = vadd.f32 %v273, %v290
    %v403 = vadd.f32 %v274, %v290
    %v404 = vadd.f32 %v275, %v290
    %v405 = vadd.f32 %v276, %v290
    %v406 = vadd.f32 %v277, %v290
    %v407 = vadd.f32 %v278, %v290
    %v408 = vadd.f32 %v279, %v290
    %v409 = vadd.f32 %v280, %v290
    %v410 = vadd.f32 %v281, %v290
    %v411 = vadd.f32 %v282, %v290
    %v412 = vadd.f32 %v283, %v290
    %v413 = vadd.f32 %v284, %v290
    %v414 = vadd.f32 %v285, %v290
    %v415 = vadd.f32 %v286, %v290
    %v416 = vadd.f32 %v287, %v290
    %v417 = vadd.f32 %v288, %v290
    %v418 = vadd.f32 %v289, %v290
    %v419 = vxor.u32 %v291, 2147483648
    %v420 = vxor.u32 %v292, 2147483648
    %v421 = vxor.u32 %v293, 2147483648
    %v422 = vxor.u32 %v294, 2147483648
    %v423 = vxor.u32 %v295, 2147483648
    %v424 = vxor.u32 %v296, 2147483648
    %v425 = vxor.u32 %v297, 2147483648
    %v426 = vxor.u32 %v298, 2147483648
    %v427 = vxor.u32 %v299, 2147483648
    %v428 = vxor.u32 %v300, 2147483648
    %v429 = vxor.u32 %v301, 2147483648
    %v430 = vxor.u32 %v302, 2147483648
    %v431 = vxor.u32 %v303, 2147483648
    %v432 = vxor.u32 %v304, 2147483648
    %v433 = vxor.u32 %v305, 2147483648
    %v434 = vxor.u32 %v306, 2147483648
    %v435 = vxor.u32 %v307, 2147483648
    %v436 = vxor.u32 %v308, 2147483648
    %v437 = vxor.u32 %v309, 2147483648
    %v438 = vxor.u32 %v310, 2147483648
    %v439 = vxor.u32 %v311, 2147483648
    %v440 = vxor.u32 %v312, 2147483648
    %v441 = vxor.u32 %v313, 2147483648
    %v442 = vxor.u32 %v314, 2147483648
    %v443 = vxor.u32 %v315, 2147483648
    %v444 = vxor.u32 %v316, 2147483648
    %v445 = vxor.u32 %v317, 2147483648
    %v446 = vxor.u32 %v318, 2147483648
    %v447 = vxor.u32 %v319, 2147483648
    %v448 = vxor.u32 %v320, 2147483648
    %v449 = vxor.u32 %v321, 2147483648
    %v450 = vxor.u32 %v322, 2147483648
    %v451 = vxor.u32 %v323, 2147483648
    %v452 = vxor.u32 %v324, 2147483648
    %v453 = vxor.u32 %v325, 2147483648
    %v454 = vxor.u32 %v326, 2147483648
    %v455 = vxor.u32 %v327, 2147483648
    %v456 = vxor.u32 %v328, 2147483648
    %v457 = vxor.u32 %v329, 2147483648
    %v458 = vxor.u32 %v330, 2147483648
    %v459 = vxor.u32 %v331, 2147483648
    %v460 = vxor.u32 %v332, 2147483648
    %v461 = vxor.u32 %v333, 2147483648
    %v462 = vxor.u32 %v334, 2147483648
    %v463 = vxor.u32 %v335, 2147483648
    %v464 = vxor.u32 %v336, 2147483648
    %v465 = vxor.u32 %v337, 2147483648
    %v466 = vxor.u32 %v338, 2147483648
    %v467 = vxor.u32 %v339, 2147483648
    %v468 = vxor.u32 %v340, 2147483648
    %v469 = vxor.u32 %v341, 2147483648
    %v470 = vxor.u32 %v342, 2147483648
    %v471 = vxor.u32 %v343, 2147483648
    %v472 = vxor.u32 %v344, 2147483648
    %v473 = vxor.u32 %v345, 2147483648
    %v474 = vxor.u32 %v346, 2147483648
    %v475 = vxor.u32 %v347, 2147483648
    %v476 = vxor.u32 %v348, 2147483648
    %v477 = vxor.u32 %v349, 2147483648
    %v478 = vxor.u32 %v350, 2147483648
    %v479 = vxor.u32 %v351, 2147483648
    %v480 = vxor.u32 %v352, 2147483648
    %v481 = vxor.u32 %v353, 2147483648
    %v482 = vxor.u32 %v354, 2147483648
    %v483 = vxor.u32 %v355, 2147483648
    %v484 = vxor.u32 %v356, 2147483648
    %v485 = vxor.u32 %v357, 2147483648
    %v486 = vxor.u32 %v358, 2147483648
    %v487 = vxor.u32 %v359, 2147483648
    %v488 = vxor.u32 %v360, 2147483648
    %v489 = vxor.u32 %v361, 2147483648
    %v490 = vxor.u32 %v362, 2147483648
    %v491 = vxor.u32 %v363, 2147483648
    %v492 = vxor.u32 %v364, 2147483648
    %v493 = vxor.u32 %v365, 2147483648
    %v494 = vxor.u32 %v366, 2147483648
    %v495 = vxor.u32 %v367, 2147483648
    %v496 = vxor.u32 %v368, 2147483648
    %v497 = vxor.u32 %v369, 2147483648
    %v498 = vxor.u32 %v370, 2147483648
    %v499 = vxor.u32 %v371, 2147483648
    %v500 = vxor.u32 %v372, 2147483648
    %v501 = vxor.u32 %v373, 2147483648
    %v502 = vxor.u32 %v374, 2147483648
    %v503 = vxor.u32 %v375, 2147483648
    %v504 = vxor.u32 %v376, 2147483648
    %v505 = vxor.u32 %v377, 2147483648
    %v506 = vxor.u32 %v378, 2147483648
    %v507 = vxor.u32 %v379, 2147483648
    %v508 = vxor.u32 %v380, 2147483648
    %v509 = vxor.u32 %v381, 2147483648
    %v510 = vxor.u32 %v382, 2147483648
    %v511 = vxor.u32 %v383, 2147483648
    %v512 = vxor.u32 %v384, 2147483648
    %v513 = vxor.u32 %v385, 2147483648
    %v514 = vxor.u32 %v386, 2147483648
    %v515 = vxor.u32 %v387, 2147483648
    %v516 = vxor.u32 %v388, 2147483648
    %v517 = vxor.u32 %v389, 2147483648
    %v518 = vxor.u32 %v390, 2147483648
    %v519 = vxor.u32 %v391, 2147483648
    %v520 = vxor.u32 %v392, 2147483648
    %v521 = vxor.u32 %v393, 2147483648
    %v522 = vxor.u32 %v394, 2147483648
    %v523 = vxor.u32 %v395, 2147483648
    %v524 = vxor.u32 %v396, 2147483648
    %v525 = vxor.u32 %v397, 2147483648
    %v526 = vxor.u32 %v398, 2147483648
    %v527 = vxor.u32 %v399, 2147483648
    %v528 = vxor.u32 %v400, 2147483648
    %v529 = vxor.u32 %v401, 2147483648
    %v530 = vxor.u32 %v402, 2147483648
    %v531 = vxor.u32 %v403, 2147483648
    %v532 = vxor.u32 %v404, 2147483648
    %v533 = vxor.u32 %v405, 2147483648
    %v534 = vxor.u32 %v406, 2147483648
    %v535 = vxor.u32 %v407, 2147483648
    %v536 = vxor.u32 %v408, 2147483648
    %v537 = vxor.u32 %v409, 2147483648
    %v538 = vxor.u32 %v410, 2147483648
    %v539 = vxor.u32 %v411, 2147483648
    %v540 = vxor.u32 %v412, 2147483648
    %v541 = vxor.u32 %v413, 2147483648
    %v542 = vxor.u32 %v414, 2147483648
    %v543 = vxor.u32 %v415, 2147483648
    %v544 = vxor.u32 %v416, 2147483648
    %v545 = vxor.u32 %v417, 2147483648
    %v546 = vxor.u32 %v418, 2147483648
    %v547 = vmul.f32 %v419, 1.442695
    %v548 = vpow.pop %v547
    %v549 = vmul.f32 %v420, 1.442695
    %v550 = vpow.pop %v549
    %v551 = vmul.f32 %v421, 1.442695
    %v552 = vpow.pop %v551
    %v553 = vmul.f32 %v422, 1.442695
    %v554 = vpow.pop %v553
    %v555 = vmul.f32 %v423, 1.442695
    %v556 = vpow.pop %v555
    %v557 = vmul.f32 %v424, 1.442695
    %v558 = vpow.pop %v557
    %v559 = vmul.f32 %v425, 1.442695
    %v560 = vpow.pop %v559
    %v561 = vmul.f32 %v426, 1.442695
    %v562 = vpow.pop %v561
    %v563 = vmul.f32 %v427, 1.442695
    %v564 = vpow.pop %v563
    %v565 = vmul.f32 %v428, 1.442695
    %v566 = vpow.pop %v565
    %v567 = vmul.f32 %v429, 1.442695
    %v568 = vpow.pop %v567
    %v569 = vmul.f32 %v430, 1.442695
    %v570 = vpow.pop %v569
    %v571 = vmul.f32 %v431, 1.442695
    %v572 = vpow.pop %v571
    %v573 = vmul.f32 %v432, 1.442695
    %v574 = vpow.pop %v573
    %v575 = vmul.f32 %v433, 1.442695
    %v576 = vpow.pop %v575
    %v577 = vmul.f32 %v434, 1.442695
    %v578 = vpow.pop %v577
    %v579 = vmul.f32 %v435, 1.442695
    %v580 = vpow.pop %v579
    %v581 = vmul.f32 %v436, 1.442695
    %v582 = vpow.pop %v581
    %v583 = vmul.f32 %v437, 1.442695
    %v584 = vpow.pop %v583
    %v585 = vmul.f32 %v438, 1.442695
    %v586 = vpow.pop %v585
    %v587 = vmul.f32 %v439, 1.442695
    %v588 = vpow.pop %v587
    %v589 = vmul.f32 %v440, 1.442695
    %v590 = vpow.pop %v589
    %v591 = vmul.f32 %v441, 1.442695
    %v592 = vpow.pop %v591
    %v593 = vmul.f32 %v442, 1.442695
    %v594 = vpow.pop %v593
    %v595 = vmul.f32 %v443, 1.442695
    %v596 = vpow.pop %v595
    %v597 = vmul.f32 %v444, 1.442695
    %v598 = vpow.pop %v597
    %v599 = vmul.f32 %v445, 1.442695
    %v600 = vpow.pop %v599
    %v601 = vmul.f32 %v446, 1.442695
    %v602 = vpow.pop %v601
    %v603 = vmul.f32 %v447, 1.442695
    %v604 = vpow.pop %v603
    %v605 = vmul.f32 %v448, 1.442695
    %v606 = vpow.pop %v605
    %v607 = vmul.f32 %v449, 1.442695
    %v608 = vpow.pop %v607
    %v609 = vmul.f32 %v450, 1.442695
    %v610 = vpow.pop %v609
    %v611 = vmul.f32 %v451, 1.442695
    %v612 = vpow.pop %v611
    %v613 = vmul.f32 %v452, 1.442695
    %v614 = vpow.pop %v613
    %v615 = vmul.f32 %v453, 1.442695
    %v616 = vpow.pop %v615
    %v617 = vmul.f32 %v454, 1.442695
    %v618 = vpow.pop %v617
    %v619 = vmul.f32 %v455, 1.442695
    %v620 = vpow.pop %v619
    %v621 = vmul.f32 %v456, 1.442695
    %v622 = vpow.pop %v621
    %v623 = vmul.f32 %v457, 1.442695
    %v624 = vpow.pop %v623
    %v625 = vmul.f32 %v458, 1.442695
    %v626 = vpow.pop %v625
    %v627 = vmul.f32 %v459, 1.442695
    %v628 = vpow.pop %v627
    %v629 = vmul.f32 %v460, 1.442695
    %v630 = vpow.pop %v629
    %v631 = vmul.f32 %v461, 1.442695
    %v632 = vpow.pop %v631
    %v633 = vmul.f32 %v462, 1.442695
    %v634 = vpow.pop %v633
    %v635 = vmul.f32 %v463, 1.442695
    %v636 = vpow.pop %v635
    %v637 = vmul.f32 %v464, 1.442695
    %v638 = vpow.pop %v637
    %v639 = vmul.f32 %v465, 1.442695
    %v640 = vpow.pop %v639
    %v641 = vmul.f32 %v466, 1.442695
    %v642 = vpow.pop %v641
    %v643 = vmul.f32 %v467, 1.442695
    %v644 = vpow.pop %v643
    %v645 = vmul.f32 %v468, 1.442695
    %v646 = vpow.pop %v645
    %v647 = vmul.f32 %v469, 1.442695
    %v648 = vpow.pop %v647
    %v649 = vmul.f32 %v470, 1.442695
    %v650 = vpow.pop %v649
    %v651 = vmul.f32 %v471, 1.442695
    %v652 = vpow.pop %v651
    %v653 = vmul.f32 %v472, 1.442695
    %v654 = vpow.pop %v653
    %v655 = vmul.f32 %v473, 1.442695
    %v656 = vpow.pop %v655
    %v657 = vmul.f32 %v474, 1.442695
    %v658 = vpow.pop %v657
    %v659 = vmul.f32 %v475, 1.442695
    %v660 = vpow.pop %v659
    %v661 = vmul.f32 %v476, 1.442695
    %v662 = vpow.pop %v661
    %v663 = vmul.f32 %v477, 1.442695
    %v664 = vpow.pop %v663
    %v665 = vmul.f32 %v478, 1.442695
    %v666 = vpow.pop %v665
    %v667 = vmul.f32 %v479, 1.442695
    %v668 = vpow.pop %v667
    %v669 = vmul.f32 %v480, 1.442695
    %v670 = vpow.pop %v669
    %v671 = vmul.f32 %v481, 1.442695
    %v672 = vpow.pop %v671
    %v673 = vmul.f32 %v482, 1.442695
    %v674 = vpow.pop %v673
    %v675 = vmul.f32 %v483, 1.442695
    %v676 = vpow.pop %v675
    %v677 = vmul.f32 %v484, 1.442695
    %v678 = vpow.pop %v677
    %v679 = vmul.f32 %v485, 1.442695
    %v680 = vpow.pop %v679
    %v681 = vmul.f32 %v486, 1.442695
    %v682 = vpow.pop %v681
    %v683 = vmul.f32 %v487, 1.442695
    %v684 = vpow.pop %v683
    %v685 = vmul.f32 %v488, 1.442695
    %v686 = vpow.pop %v685
    %v687 = vmul.f32 %v489, 1.442695
    %v688 = vpow.pop %v687
    %v689 = vmul.f32 %v490, 1.442695
    %v690 = vpow.pop %v689
    %v691 = vmul.f32 %v491, 1.442695
    %v692 = vpow.pop %v691
    %v693 = vmul.f32 %v492, 1.442695
    %v694 = vpow.pop %v693
    %v695 = vmul.f32 %v493, 1.442695
    %v696 = vpow.pop %v695
    %v697 = vmul.f32 %v494, 1.442695
    %v698 = vpow.pop %v697
    %v699 = vmul.f32 %v495, 1.442695
    %v700 = vpow.pop %v699
    %v701 = vmul.f32 %v496, 1.442695
    %v702 = vpow.pop %v701
    %v703 = vmul.f32 %v497, 1.442695
    %v704 = vpow.pop %v703
    %v705 = vmul.f32 %v498, 1.442695
    %v706 = vpow.pop %v705
    %v707 = vmul.f32 %v499, 1.442695
    %v708 = vpow.pop %v707
    %v709 = vmul.f32 %v500, 1.442695
    %v710 = vpow.pop %v709
    %v711 = vmul.f32 %v501, 1.442695
    %v712 = vpow.pop %v711
    %v713 = vmul.f32 %v502, 1.442695
    %v714 = vpow.pop %v713
    %v715 = vmul.f32 %v503, 1.442695
    %v716 = vpow.pop %v715
    %v717 = vmul.f32 %v504, 1.442695
    %v718 = vpow.pop %v717
    %v719 = vmul.f32 %v505, 1.442695
    %v720 = vpow.pop %v719
    %v721 = vmul.f32 %v506, 1.442695
    %v722 = vpow.pop %v721
    %v723 = vmul.f32 %v507, 1.442695
    %v724 = vpow.pop %v723
    %v725 = vmul.f32 %v508, 1.442695
    %v726 = vpow.pop %v725
    %v727 = vmul.f32 %v509, 1.442695
    %v728 = vpow.pop %v727
    %v729 = vmul.f32 %v510, 1.442695
    %v730 = vpow.pop %v729
    %v731 = vmul.f32 %v511, 1.442695
    %v732 = vpow.pop %v731
    %v733 = vmul.f32 %v512, 1.442695
    %v734 = vpow.pop %v733
    %v735 = vmul.f32 %v513, 1.442695
    %v736 = vpow.pop %v735
    %v737 = vmul.f32 %v514, 1.442695
    %v738 = vpow.pop %v737
    %v739 = vmul.f32 %v515, 1.442695
    %v740 = vpow.pop %v739
    %v741 = vmul.f32 %v516, 1.442695
    %v742 = vpow.pop %v741
    %v743 = vmul.f32 %v517, 1.442695
    %v744 = vpow.pop %v743
    %v745 = vmul.f32 %v518, 1.442695
    %v746 = vpow.pop %v745
    %v747 = vmul.f32 %v519, 1.442695
    %v748 = vpow.pop %v747
    %v749 = vmul.f32 %v520, 1.442695
    %v750 = vpow.pop %v749
    %v751 = vmul.f32 %v521, 1.442695
    %v752 = vpow.pop %v751
    %v753 = vmul.f32 %v522, 1.442695
    %v754 = vpow.pop %v753
    %v755 = vmul.f32 %v523, 1.442695
    %v756 = vpow.pop %v755
    %v757 = vmul.f32 %v524, 1.442695
    %v758 = vpow.pop %v757
    %v759 = vmul.f32 %v525, 1.442695
    %v760 = vpow.pop %v759
    %v761 = vmul.f32 %v526, 1.442695
    %v762 = vpow.pop %v761
    %v763 = vmul.f32 %v527, 1.442695
    %v764 = vpow.pop %v763
    %v765 = vmul.f32 %v528, 1.442695
    %v766 = vpow.pop %v765
    %v767 = vmul.f32 %v529, 1.442695
    %v768 = vpow.pop %v767
    %v769 = vmul.f32 %v530, 1.442695
    %v770 = vpow.pop %v769
    %v771 = vmul.f32 %v531, 1.442695
    %v772 = vpow.pop %v771
    %v773 = vmul.f32 %v532, 1.442695
    %v774 = vpow.pop %v773
    %v775 = vmul.f32 %v533, 1.442695
    %v776 = vpow.pop %v775
    %v777 = vmul.f32 %v534, 1.442695
    %v778 = vpow.pop %v777
    %v779 = vmul.f32 %v535, 1.442695
    %v780 = vpow.pop %v779
    %v781 = vmul.f32 %v536, 1.442695
    %v782 = vpow.pop %v781
    %v783 = vmul.f32 %v537, 1.442695
    %v784 = vpow.pop %v783
    %v785 = vmul.f32 %v538, 1.442695
    %v786 = vpow.pop %v785
    %v787 = vmul.f32 %v539, 1.442695
    %v788 = vpow.pop %v787
    %v789 = vmul.f32 %v540, 1.442695
    %v790 = vpow.pop %v789
    %v791 = vmul.f32 %v541, 1.442695
    %v792 = vpow.pop %v791
    %v793 = vmul.f32 %v542, 1.442695
    %v794 = vpow.pop %v793
    %v795 = vmul.f32 %v543, 1.442695
    %v796 = vpow.pop %v795
    %v797 = vmul.f32 %v544, 1.442695
    %v798 = vpow.pop %v797
    %v799 = vmul.f32 %v545, 1.442695
    %v800 = vpow.pop %v799
    %v801 = vmul.f32 %v546, 1.442695
    %v802 = vpow.pop %v801
    %v803 = vadd.f32 %v548, 1.0
    %v804 = vadd.f32 %v550, 1.0
    %v805 = vadd.f32 %v552, 1.0
    %v806 = vadd.f32 %v554, 1.0
    %v807 = vadd.f32 %v556, 1.0
    %v808 = vadd.f32 %v558, 1.0
    %v809 = vadd.f32 %v560, 1.0
    %v810 = vadd.f32 %v562, 1.0
    %v811 = vadd.f32 %v564, 1.0
    %v812 = vadd.f32 %v566, 1.0
    %v813 = vadd.f32 %v568, 1.0
    %v814 = vadd.f32 %v570, 1.0
    %v815 = vadd.f32 %v572, 1.0
    %v816 = vadd.f32 %v574, 1.0
    %v817 = vadd.f32 %v576, 1.0
    %v818 = vadd.f32 %v578, 1.0
    %v819 = vadd.f32 %v580, 1.0
    %v820 = vadd.f32 %v582, 1.0
    %v821 = vadd.f32 %v584, 1.0
    %v822 = vadd.f32 %v586, 1.0
    %v823 = vadd.f32 %v588, 1.0
    %v824 = vadd.f32 %v590, 1.0
    %v825 = vadd.f32 %v592, 1.0
    %v826 = vadd.f32 %v594, 1.0
    %v827 = vadd.f32 %v596, 1.0
    %v828 = vadd.f32 %v598, 1.0
    %v829 = vadd.f32 %v600, 1.0
    %v830 = vadd.f32 %v602, 1.0
    %v831 = vadd.f32 %v604, 1.0
    %v832 = vadd.f32 %v606, 1.0
    %v833 = vadd.f32 %v608, 1.0
    %v834 = vadd.f32 %v610, 1.0
    %v835 = vadd.f32 %v612, 1.0
    %v836 = vadd.f32 %v614, 1.0
    %v837 = vadd.f32 %v616, 1.0
    %v838 = vadd.f32 %v618, 1.0
    %v839 = vadd.f32 %v620, 1.0
    %v840 = vadd.f32 %v622, 1.0
    %v841 = vadd.f32 %v624, 1.0
    %v842 = vadd.f32 %v626, 1.0
    %v843 = vadd.f32 %v628, 1.0
    %v844 = vadd.f32 %v630, 1.0
    %v845 = vadd.f32 %v632, 1.0
    %v846 = vadd.f32 %v634, 1.0
    %v847 = vadd.f32 %v636, 1.0
    %v848 = vadd.f32 %v638, 1.0
    %v849 = vadd.f32 %v640, 1.0
    %v850 = vadd.f32 %v642, 1.0
    %v851 = vadd.f32 %v644, 1.0
    %v852 = vadd.f32 %v646, 1.0
    %v853 = vadd.f32 %v648, 1.0
    %v854 = vadd.f32 %v650, 1.0
    %v855 = vadd.f32 %v652, 1.0
    %v856 = vadd.f32 %v654, 1.0
    %v857 = vadd.f32 %v656, 1.0
    %v858 = vadd.f32 %v658, 1.0
    %v859 = vadd.f32 %v660, 1.0
    %v860 = vadd.f32 %v662, 1.0
    %v861 = vadd.f32 %v664, 1.0
    %v862 = vadd.f32 %v666, 1.0
    %v863 = vadd.f32 %v668, 1.0
    %v864 = vadd.f32 %v670, 1.0
    %v865 = vadd.f32 %v672, 1.0
    %v866 = vadd.f32 %v674, 1.0
    %v867 = vadd.f32 %v676, 1.0
    %v868 = vadd.f32 %v678, 1.0
    %v869 = vadd.f32 %v680, 1.0
    %v870 = vadd.f32 %v682, 1.0
    %v871 = vadd.f32 %v684, 1.0
    %v872 = vadd.f32 %v686, 1.0
    %v873 = vadd.f32 %v688, 1.0
    %v874 = vadd.f32 %v690, 1.0
    %v875 = vadd.f32 %v692, 1.0
    %v876 = vadd.f32 %v694, 1.0
    %v877 = vadd.f32 %v696, 1.0
    %v878 = vadd.f32 %v698, 1.0
    %v879 = vadd.f32 %v700, 1.0
    %v880 = vadd.f32 %v702, 1.0
    %v881 = vadd.f32 %v704, 1.0
    %v882 = vadd.f32 %v706, 1.0
    %v883 = vadd.f32 %v708, 1.0
    %v884 = vadd.f32 %v710, 1.0
    %v885 = vadd.f32 %v712, 1.0
    %v886 = vadd.f32 %v714, 1.0
    %v887 = vadd.f32 %v716, 1.0
    %v888 = vadd.f32 %v718, 1.0
    %v889 = vadd.f32 %v720, 1.0
    %v890 = vadd.f32 %v722, 1.0
    %v891 = vadd.f32 %v724, 1.0
    %v892 = vadd.f32 %v726, 1.0
    %v893 = vadd.f32 %v728, 1.0
    %v894 = vadd.f32 %v730, 1.0
    %v895 = vadd.f32 %v732, 1.0
    %v896 = vadd.f32 %v734, 1.0
    %v897 = vadd.f32 %v736, 1.0
    %v898 = vadd.f32 %v738, 1.0
    %v899 = vadd.f32 %v740, 1.0
    %v900 = vadd.f32 %v742, 1.0
    %v901 = vadd.f32 %v744, 1.0
    %v902 = vadd.f32 %v746, 1.0
    %v903 = vadd.f32 %v748, 1.0
    %v904 = vadd.f32 %v750, 1.0
    %v905 = vadd.f32 %v752, 1.0
    %v906 = vadd.f32 %v754, 1.0
    %v907 = vadd.f32 %v756, 1.0
    %v908 = vadd.f32 %v758, 1.0
    %v909 = vadd.f32 %v760, 1.0
    %v910 = vadd.f32 %v762, 1.0
    %v911 = vadd.f32 %v764, 1.0
    %v912 = vadd.f32 %v766, 1.0
    %v913 = vadd.f32 %v768, 1.0
    %v914 = vadd.f32 %v770, 1.0
    %v915 = vadd.f32 %v772, 1.0
    %v916 = vadd.f32 %v774, 1.0
    %v917 = vadd.f32 %v776, 1.0
    %v918 = vadd.f32 %v778, 1.0
    %v919 = vadd.f32 %v780, 1.0
    %v920 = vadd.f32 %v782, 1.0
    %v921 = vadd.f32 %v784, 1.0
    %v922 = vadd.f32 %v786, 1.0
    %v923 = vadd.f32 %v788, 1.0
    %v924 = vadd.f32 %v790, 1.0
    %v925 = vadd.f32 %v792, 1.0
    %v926 = vadd.f32 %v794, 1.0
    %v927 = vadd.f32 %v796, 1.0
    %v928 = vadd.f32 %v798, 1.0
    %v929 = vadd.f32 %v800, 1.0
    %v930 = vadd.f32 %v802, 1.0
    %v931 = vrcp.pop %v803
    %v932 = vmul.f32 1.0, %v931
    %v933 = vrcp.pop %v804
    %v934 = vmul.f32 1.0, %v933
    %v935 = vrcp.pop %v805
    %v936 = vmul.f32 1.0, %v935
    %v937 = vrcp.pop %v806
    %v938 = vmul.f32 1.0, %v937
    %v939 = vrcp.pop %v807
    %v940 = vmul.f32 1.0, %v939
    %v941 = vrcp.pop %v808
    %v942 = vmul.f32 1.0, %v941
    %v943 = vrcp.pop %v809
    %v944 = vmul.f32 1.0, %v943
    %v945 = vrcp.pop %v810
    %v946 = vmul.f32 1.0, %v945
    %v947 = vrcp.pop %v811
    %v948 = vmul.f32 1.0, %v947
    %v949 = vrcp.pop %v812
    %v950 = vmul.f32 1.0, %v949
    %v951 = vrcp.pop %v813
    %v952 = vmul.f32 1.0, %v951
    %v953 = vrcp.pop %v814
    %v954 = vmul.f32 1.0, %v953
    %v955 = vrcp.pop %v815
    %v956 = vmul.f32 1.0, %v955
    %v957 = vrcp.pop %v816
    %v958 = vmul.f32 1.0, %v957
    %v959 = vrcp.pop %v817
    %v960 = vmul.f32 1.0, %v959
    %v961 = vrcp.pop %v818
    %v962 = vmul.f32 1.0, %v961
    %v963 = vrcp.pop %v819
    %v964 = vmul.f32 1.0, %v963
    %v965 = vrcp.pop %v820
    %v966 = vmul.f32 1.0, %v965
    %v967 = vrcp.pop %v821
    %v968 = vmul.f32 1.0, %v967
    %v969 = vrcp.pop %v822
    %v970 = vmul.f32 1.0, %v969
    %v971 = vrcp.pop %v823
    %v972 = vmul.f32 1.0, %v971
    %v973 = vrcp.pop %v824
    %v974 = vmul.f32 1.0, %v973
    %v975 = vrcp.pop %v825
    %v976 = vmul.f32 1.0, %v975
    %v977 = vrcp.pop %v826
    %v978 = vmul.f32 1.0, %v977
    %v979 = vrcp.pop %v827
    %v980 = vmul.f32 1.0, %v979
    %v981 = vrcp.pop %v828
    %v982 = vmul.f32 1.0, %v981
    %v983 = vrcp.pop %v829
    %v984 = vmul.f32 1.0, %v983
    %v985 = vrcp.pop %v830
    %v986 = vmul.f32 1.0, %v985
    %v987 = vrcp.pop %v831
    %v988 = vmul.f32 1.0, %v987
    %v989 = vrcp.pop %v832
    %v990 = vmul.f32 1.0, %v989
    %v991 = vrcp.pop %v833
    %v992 = vmul.f32 1.0, %v991
    %v993 = vrcp.pop %v834
    %v994 = vmul.f32 1.0, %v993
    %v995 = vrcp.pop %v835
    %v996 = vmul.f32 1.0, %v995
    %v997 = vrcp.pop %v836
    %v998 = vmul.f32 1.0, %v997
    %v999 = vrcp.pop %v837
    %v1000 = vmul.f32 1.0, %v999
    %v1001 = vrcp.pop %v838
    %v1002 = vmul.f32 1.0, %v1001
    %v1003 = vrcp.pop %v839
    %v1004 = vmul.f32 1.0, %v1003
    %v1005 = vrcp.pop %v840
    %v1006 = vmul.f32 1.0, %v1005
    %v1007 = vrcp.pop %v841
    %v1008 = vmul.f32 1.0, %v1007
    %v1009 = vrcp.pop %v842
    %v1010 = vmul.f32 1.0, %v1009
    %v1011 = vrcp.pop %v843
    %v1012 = vmul.f32 1.0, %v1011
    %v1013 = vrcp.pop %v844
    %v1014 = vmul.f32 1.0, %v1013
    %v1015 = vrcp.pop %v845
    %v1016 = vmul.f32 1.0, %v1015
    %v1017 = vrcp.pop %v846
    %v1018 = vmul.f32 1.0, %v1017
    %v1019 = vrcp.pop %v847
    %v1020 = vmul.f32 1.0, %v1019
    %v1021 = vrcp.pop %v848
    %v1022 = vmul.f32 1.0, %v1021
    %v1023 = vrcp.pop %v849
    %v1024 = vmul.f32 1.0, %v1023
    %v1025 = vrcp.pop %v850
    %v1026 = vmul.f32 1.0, %v1025
    %v1027 = vrcp.pop %v851
    %v1028 = vmul.f32 1.0, %v1027
    %v1029 = vrcp.pop %v852
    %v1030 = vmul.f32 1.0, %v1029
    %v1031 = vrcp.pop %v853
    %v1032 = vmul.f32 1.0, %v1031
    %v1033 = vrcp.pop %v854
    %v1034 = vmul.f32 1.0, %v1033
    %v1035 = vrcp.pop %v855
    %v1036 = vmul.f32 1.0, %v1035
    %v1037 = vrcp.pop %v856
    %v1038 = vmul.f32 1.0, %v1037
    %v1039 = vrcp.pop %v857
    %v1040 = vmul.f32 1.0, %v1039
    %v1041 = vrcp.pop %v858
    %v1042 = vmul.f32 1.0, %v1041
    %v1043 = vrcp.pop %v859
    %v1044 = vmul.f32 1.0, %v1043
    %v1045 = vrcp.pop %v860
    %v1046 = vmul.f32 1.0, %v1045
    %v1047 = vrcp.pop %v861
    %v1048 = vmul.f32 1.0, %v1047
    %v1049 = vrcp.pop %v862
    %v1050 = vmul.f32 1.0, %v1049
    %v1051 = vrcp.pop %v863
    %v1052 = vmul.f32 1.0, %v1051
    %v1053 = vrcp.pop %v864
    %v1054 = vmul.f32 1.0, %v1053
    %v1055 = vrcp.pop %v865
    %v1056 = vmul.f32 1.0, %v1055
    %v1057 = vrcp.pop %v866
    %v1058 = vmul.f32 1.0, %v1057
    %v1059 = vrcp.pop %v867
    %v1060 = vmul.f32 1.0, %v1059
    %v1061 = vrcp.pop %v868
    %v1062 = vmul.f32 1.0, %v1061
    %v1063 = vrcp.pop %v869
    %v1064 = vmul.f32 1.0, %v1063
    %v1065 = vrcp.pop %v870
    %v1066 = vmul.f32 1.0, %v1065
    %v1067 = vrcp.pop %v871
    %v1068 = vmul.f32 1.0, %v1067
    %v1069 = vrcp.pop %v872
    %v1070 = vmul.f32 1.0, %v1069
    %v1071 = vrcp.pop %v873
    %v1072 = vmul.f32 1.0, %v1071
    %v1073 = vrcp.pop %v874
    %v1074 = vmul.f32 1.0, %v1073
    %v1075 = vrcp.pop %v875
    %v1076 = vmul.f32 1.0, %v1075
    %v1077 = vrcp.pop %v876
    %v1078 = vmul.f32 1.0, %v1077
    %v1079 = vrcp.pop %v877
    %v1080 = vmul.f32 1.0, %v1079
    %v1081 = vrcp.pop %v878
    %v1082 = vmul.f32 1.0, %v1081
    %v1083 = vrcp.pop %v879
    %v1084 = vmul.f32 1.0, %v1083
    %v1085 = vrcp.pop %v880
    %v1086 = vmul.f32 1.0, %v1085
    %v1087 = vrcp.pop %v881
    %v1088 = vmul.f32 1.0, %v1087
    %v1089 = vrcp.pop %v882
    %v1090 = vmul.f32 1.0, %v1089
    %v1091 = vrcp.pop %v883
    %v1092 = vmul.f32 1.0, %v1091
    %v1093 = vrcp.pop %v884
    %v1094 = vmul.f32 1.0, %v1093
    %v1095 = vrcp.pop %v885
    %v1096 = vmul.f32 1.0, %v1095
    %v1097 = vrcp.pop %v886
    %v1098 = vmul.f32 1.0, %v1097
    %v1099 = vrcp.pop %v887
    %v1100 = vmul.f32 1.0, %v1099
    %v1101 = vrcp.pop %v888
    %v1102 = vmul.f32 1.0, %v1101
    %v1103 = vrcp.pop %v889
    %v1104 = vmul.f32 1.0, %v1103
    %v1105 = vrcp.pop %v890
    %v1106 = vmul.f32 1.0, %v1105
    %v1107 = vrcp.pop %v891
    %v1108 = vmul.f32 1.0, %v1107
    %v1109 = vrcp.pop %v892
    %v1110 = vmul.f32 1.0, %v1109
    %v1111 = vrcp.pop %v893
    %v1112 = vmul.f32 1.0, %v1111
    %v1113 = vrcp.pop %v894
    %v1114 = vmul.f32 1.0, %v1113
    %v1115 = vrcp.pop %v895
    %v1116 = vmul.f32 1.0, %v1115
    %v1117 = vrcp.pop %v896
    %v1118 = vmul.f32 1.0, %v1117
    %v1119 = vrcp.pop %v897
    %v1120 = vmul.f32 1.0, %v1119
    %v1121 = vrcp.pop %v898
    %v1122 = vmul.f32 1.0, %v1121
    %v1123 = vrcp.pop %v899
    %v1124 = vmul.f32 1.0, %v1123
    %v1125 = vrcp.pop %v900
    %v1126 = vmul.f32 1.0, %v1125
    %v1127 = vrcp.pop %v901
    %v1128 = vmul.f32 1.0, %v1127
    %v1129 = vrcp.pop %v902
    %v1130 = vmul.f32 1.0, %v1129
    %v1131 = vrcp.pop %v903
    %v1132 = vmul.f32 1.0, %v1131
    %v1133 = vrcp.pop %v904
    %v1134 = vmul.f32 1.0, %v1133
    %v1135 = vrcp.pop %v905
    %v1136 = vmul.f32 1.0, %v1135
    %v1137 = vrcp.pop %v906
    %v1138 = vmul.f32 1.0, %v1137
    %v1139 = vrcp.pop %v907
    %v1140 = vmul.f32 1.0, %v1139
    %v1141 = vrcp.pop %v908
    %v1142 = vmul.f32 1.0, %v1141
    %v1143 = vrcp.pop %v909
    %v1144 = vmul.f32 1.0, %v1143
    %v1145 = vrcp.pop %v910
    %v1146 = vmul.f32 1.0, %v1145
    %v1147 = vrcp.pop %v911
    %v1148 = vmul.f32 1.0, %v1147
    %v1149 = vrcp.pop %v912
    %v1150 = vmul.f32 1.0, %v1149
    %v1151 = vrcp.pop %v913
    %v1152 = vmul.f32 1.0, %v1151
    %v1153 = vrcp.pop %v914
    %v1154 = vmul.f32 1.0, %v1153
    %v1155 = vrcp.pop %v915
    %v1156 = vmul.f32 1.0, %v1155
    %v1157 = vrcp.pop %v916
    %v1158 = vmul.f32 1.0, %v1157
    %v1159 = vrcp.pop %v917
    %v1160 = vmul.f32 1.0, %v1159
    %v1161 = vrcp.pop %v918
    %v1162 = vmul.f32 1.0, %v1161
    %v1163 = vrcp.pop %v919
    %v1164 = vmul.f32 1.0, %v1163
    %v1165 = vrcp.pop %v920
    %v1166 = vmul.f32 1.0, %v1165
    %v1167 = vrcp.pop %v921
    %v1168 = vmul.f32 1.0, %v1167
    %v1169 = vrcp.pop %v922
    %v1170 = vmul.f32 1.0, %v1169
    %v1171 = vrcp.pop %v923
    %v1172 = vmul.f32 1.0, %v1171
    %v1173 = vrcp.pop %v924
    %v1174 = vmul.f32 1.0, %v1173
    %v1175 = vrcp.pop %v925
    %v1176 = vmul.f32 1.0, %v1175
    %v1177 = vrcp.pop %v926
    %v1178 = vmul.f32 1.0, %v1177
    %v1179 = vrcp.pop %v927
    %v1180 = vmul.f32 1.0, %v1179
    %v1181 = vrcp.pop %v928
    %v1182 = vmul.f32 1.0, %v1181
    %v1183 = vrcp.pop %v929
    %v1184 = vmul.f32 1.0, %v1183
    %v1185 = vrcp.pop %v930
    %v1186 = vmul.f32 1.0, %v1185
    %1187 = vst [vmem:[#allocation7] sm:$0xff] %v932
    %1188 = vst [vmem:[#allocation7 + $0x8] sm:$0xff] %v934
    %1189 = vst [vmem:[#allocation7 + $0x10] sm:$0xff] %v936
    %1190 = vst [vmem:[#allocation7 + $0x18] sm:$0xff] %v938
    %1191 = vst [vmem:[#allocation7 + $0x20] sm:$0xff] %v940
    %1192 = vst [vmem:[#allocation7 + $0x28] sm:$0xff] %v942
    %1193 = vst [vmem:[#allocation7 + $0x30] sm:$0xff] %v944
    %1194 = vst [vmem:[#allocation7 + $0x38] sm:$0xff] %v946
    %1195 = vst [vmem:[#allocation7 + $0x40] sm:$0xff] %v948
    %1196 = vst [vmem:[#allocation7 + $0x48] sm:$0xff] %v950
    %1197 = vst [vmem:[#allocation7 + $0x50] sm:$0xff] %v952
    %1198 = vst [vmem:[#allocation7 + $0x58] sm:$0xff] %v954
    %1199 = vst [vmem:[#allocation7 + $0x60] sm:$0xff] %v956
    %1200 = vst [vmem:[#allocation7 + $0x68] sm:$0xff] %v958
    %1201 = vst [vmem:[#allocation7 + $0x70] sm:$0xff] %v960
    %1202 = vst [vmem:[#allocation7 + $0x78] sm:$0xff] %v962
    %1203 = vst [vmem:[#allocation7 + $0x80] sm:$0xff] %v964
    %1204 = vst [vmem:[#allocation7 + $0x88] sm:$0xff] %v966
    %1205 = vst [vmem:[#allocation7 + $0x90] sm:$0xff] %v968
    %1206 = vst [vmem:[#allocation7 + $0x98] sm:$0xff] %v970
    %1207 = vst [vmem:[#allocation7 + $0xa0] sm:$0xff] %v972
    %1208 = vst [vmem:[#allocation7 + $0xa8] sm:$0xff] %v974
    %1209 = vst [vmem:[#allocation7 + $0xb0] sm:$0xff] %v976
    %1210 = vst [vmem:[#allocation7 + $0xb8] sm:$0xff] %v978
    %1211 = vst [vmem:[#allocation7 + $0xc0] sm:$0xff] %v980
    %1212 = vst [vmem:[#allocation7 + $0xc8] sm:$0xff] %v982
    %1213 = vst [vmem:[#allocation7 + $0xd0] sm:$0xff] %v984
    %1214 = vst [vmem:[#allocation7 + $0xd8] sm:$0xff] %v986
    %1215 = vst [vmem:[#allocation7 + $0xe0] sm:$0xff] %v988
    %1216 = vst [vmem:[#allocation7 + $0xe8] sm:$0xff] %v990
    %1217 = vst [vmem:[#allocation7 + $0xf0] sm:$0xff] %v992
    %1218 = vst [vmem:[#allocation7 + $0xf8] sm:$0xff] %v994
    %1219 = vst [vmem:[#allocation7 + $0x100] sm:$0xff] %v996
    %1220 = vst [vmem:[#allocation7 + $0x108] sm:$0xff] %v998
    %1221 = vst [vmem:[#allocation7 + $0x110] sm:$0xff] %v1000
    %1222 = vst [vmem:[#allocation7 + $0x118] sm:$0xff] %v1002
    %1223 = vst [vmem:[#allocation7 + $0x120] sm:$0xff] %v1004
    %1224 = vst [vmem:[#allocation7 + $0x128] sm:$0xff] %v1006
    %1225 = vst [vmem:[#allocation7 + $0x130] sm:$0xff] %v1008
    %1226 = vst [vmem:[#allocation7 + $0x138] sm:$0xff] %v1010
    %1227 = vst [vmem:[#allocation7 + $0x140] sm:$0xff] %v1012
    %1228 = vst [vmem:[#allocation7 + $0x148] sm:$0xff] %v1014
    %1229 = vst [vmem:[#allocation7 + $0x150] sm:$0xff] %v1016
    %1230 = vst [vmem:[#allocation7 + $0x158] sm:$0xff] %v1018
    %1231 = vst [vmem:[#allocation7 + $0x160] sm:$0xff] %v1020
    %1232 = vst [vmem:[#allocation7 + $0x168] sm:$0xff] %v1022
    %1233 = vst [vmem:[#allocation7 + $0x170] sm:$0xff] %v1024
    %1234 = vst [vmem:[#allocation7 + $0x178] sm:$0xff] %v1026
    %1235 = vst [vmem:[#allocation7 + $0x180] sm:$0xff] %v1028
    %1236 = vst [vmem:[#allocation7 + $0x188] sm:$0xff] %v1030
    %1237 = vst [vmem:[#allocation7 + $0x190] sm:$0xff] %v1032
    %1238 = vst [vmem:[#allocation7 + $0x198] sm:$0xff] %v1034
    %1239 = vst [vmem:[#allocation7 + $0x1a0] sm:$0xff] %v1036
    %1240 = vst [vmem:[#allocation7 + $0x1a8] sm:$0xff] %v1038
    %1241 = vst [vmem:[#allocation7 + $0x1b0] sm:$0xff] %v1040
    %1242 = vst [vmem:[#allocation7 + $0x1b8] sm:$0xff] %v1042
    %1243 = vst [vmem:[#allocation7 + $0x1c0] sm:$0xff] %v1044
    %1244 = vst [vmem:[#allocation7 + $0x1c8] sm:$0xff] %v1046
    %1245 = vst [vmem:[#allocation7 + $0x1d0] sm:$0xff] %v1048
    %1246 = vst [vmem:[#allocation7 + $0x1d8] sm:$0xff] %v1050
    %1247 = vst [vmem:[#allocation7 + $0x1e0] sm:$0xff] %v1052
    %1248 = vst [vmem:[#allocation7 + $0x1e8] sm:$0xff] %v1054
    %1249 = vst [vmem:[#allocation7 + $0x1f0] sm:$0xff] %v1056
    %1250 = vst [vmem:[#allocation7 + $0x1f8] sm:$0xff] %v1058
    %1251 = vst [vmem:[#allocation7 + $0x200] sm:$0xff] %v1060
    %1252 = vst [vmem:[#allocation7 + $0x208] sm:$0xff] %v1062
    %1253 = vst [vmem:[#allocation7 + $0x210] sm:$0xff] %v1064
    %1254 = vst [vmem:[#allocation7 + $0x218] sm:$0xff] %v1066
    %1255 = vst [vmem:[#allocation7 + $0x220] sm:$0xff] %v1068
    %1256 = vst [vmem:[#allocation7 + $0x228] sm:$0xff] %v1070
    %1257 = vst [vmem:[#allocation7 + $0x230] sm:$0xff] %v1072
    %1258 = vst [vmem:[#allocation7 + $0x238] sm:$0xff] %v1074
    %1259 = vst [vmem:[#allocation7 + $0x240] sm:$0xff] %v1076
    %1260 = vst [vmem:[#allocation7 + $0x248] sm:$0xff] %v1078
    %1261 = vst [vmem:[#allocation7 + $0x250] sm:$0xff] %v1080
    %1262 = vst [vmem:[#allocation7 + $0x258] sm:$0xff] %v1082
    %1263 = vst [vmem:[#allocation7 + $0x260] sm:$0xff] %v1084
    %1264 = vst [vmem:[#allocation7 + $0x268] sm:$0xff] %v1086
    %1265 = vst [vmem:[#allocation7 + $0x270] sm:$0xff] %v1088
    %1266 = vst [vmem:[#allocation7 + $0x278] sm:$0xff] %v1090
    %1267 = vst [vmem:[#allocation7 + $0x280] sm:$0xff] %v1092
    %1268 = vst [vmem:[#allocation7 + $0x288] sm:$0xff] %v1094
    %1269 = vst [vmem:[#allocation7 + $0x290] sm:$0xff] %v1096
    %1270 = vst [vmem:[#allocation7 + $0x298] sm:$0xff] %v1098
    %1271 = vst [vmem:[#allocation7 + $0x2a0] sm:$0xff] %v1100
    %1272 = vst [vmem:[#allocation7 + $0x2a8] sm:$0xff] %v1102
    %1273 = vst [vmem:[#allocation7 + $0x2b0] sm:$0xff] %v1104
    %1274 = vst [vmem:[#allocation7 + $0x2b8] sm:$0xff] %v1106
    %1275 = vst [vmem:[#allocation7 + $0x2c0] sm:$0xff] %v1108
    %1276 = vst [vmem:[#allocation7 + $0x2c8] sm:$0xff] %v1110
    %1277 = vst [vmem:[#allocation7 + $0x2d0] sm:$0xff] %v1112
    %1278 = vst [vmem:[#allocation7 + $0x2d8] sm:$0xff] %v1114
    %1279 = vst [vmem:[#allocation7 + $0x2e0] sm:$0xff] %v1116
    %1280 = vst [vmem:[#allocation7 + $0x2e8] sm:$0xff] %v1118
    %1281 = vst [vmem:[#allocation7 + $0x2f0] sm:$0xff] %v1120
    %1282 = vst [vmem:[#allocation7 + $0x2f8] sm:$0xff] %v1122
    %1283 = vst [vmem:[#allocation7 + $0x300] sm:$0xff] %v1124
    %1284 = vst [vmem:[#allocation7 + $0x308] sm:$0xff] %v1126
    %1285 = vst [vmem:[#allocation7 + $0x310] sm:$0xff] %v1128
    %1286 = vst [vmem:[#allocation7 + $0x318] sm:$0xff] %v1130
    %1287 = vst [vmem:[#allocation7 + $0x320] sm:$0xff] %v1132
    %1288 = vst [vmem:[#allocation7 + $0x328] sm:$0xff] %v1134
    %1289 = vst [vmem:[#allocation7 + $0x330] sm:$0xff] %v1136
    %1290 = vst [vmem:[#allocation7 + $0x338] sm:$0xff] %v1138
    %1291 = vst [vmem:[#allocation7 + $0x340] sm:$0xff] %v1140
    %1292 = vst [vmem:[#allocation7 + $0x348] sm:$0xff] %v1142
    %1293 = vst [vmem:[#allocation7 + $0x350] sm:$0xff] %v1144
    %1294 = vst [vmem:[#allocation7 + $0x358] sm:$0xff] %v1146
    %1295 = vst [vmem:[#allocation7 + $0x360] sm:$0xff] %v1148
    %1296 = vst [vmem:[#allocation7 + $0x368] sm:$0xff] %v1150
    %1297 = vst [vmem:[#allocation7 + $0x370] sm:$0xff] %v1152
    %1298 = vst [vmem:[#allocation7 + $0x378] sm:$0xff] %v1154
    %1299 = vst [vmem:[#allocation7 + $0x380] sm:$0xff] %v1156
    %1300 = vst [vmem:[#allocation7 + $0x388] sm:$0xff] %v1158
    %1301 = vst [vmem:[#allocation7 + $0x390] sm:$0xff] %v1160
    %1302 = vst [vmem:[#allocation7 + $0x398] sm:$0xff] %v1162
    %1303 = vst [vmem:[#allocation7 + $0x3a0] sm:$0xff] %v1164
    %1304 = vst [vmem:[#allocation7 + $0x3a8] sm:$0xff] %v1166
    %1305 = vst [vmem:[#allocation7 + $0x3b0] sm:$0xff] %v1168
    %1306 = vst [vmem:[#allocation7 + $0x3b8] sm:$0xff] %v1170
    %1307 = vst [vmem:[#allocation7 + $0x3c0] sm:$0xff] %v1172
    %1308 = vst [vmem:[#allocation7 + $0x3c8] sm:$0xff] %v1174
    %1309 = vst [vmem:[#allocation7 + $0x3d0] sm:$0xff] %v1176
    %1310 = vst [vmem:[#allocation7 + $0x3d8] sm:$0xff] %v1178
    %1311 = vst [vmem:[#allocation7 + $0x3e0] sm:$0xff] %v1180
    %1312 = vst [vmem:[#allocation7 + $0x3e8] sm:$0xff] %v1182
    %1313 = vst [vmem:[#allocation7 + $0x3f0] sm:$0xff] %v1184
    %1314 = vst [vmem:[#allocation7 + $0x3f8] sm:$0xff] %v1186
    // Predicated region
    $region18: #{tpu_custom_call.1} parent=1 // pred_check
      _
    $region19: #{tpu_custom_call.1} parent=1 // pred_check_branch
      %1316 = sbr.rel (0) target = $region21
    $region20: #{tpu_custom_call.1} parent=1 // pred_region
      %s1318 = ssub.s32 16384, 16384
      %1319 = vsyncadd [#allocation6], %s1318
      %s1320 = sshll.u32 [#allocation7], 4
      %s1321 = int_to_ptr.vmem [resolvable:$true] %s1320
      %1326 = dma.vmem_to_hbm [thread:$0]  %s1321, 16384, %s3, [#allocation6], 512, 512, 32
    $region21: #{tpu_custom_call.1} parent=1 // pred_fallthru
      _
    // Predicated region
    $region22: #{tpu_custom_call.1} parent=1 // pred_check
      _
    $region23: #{tpu_custom_call.1} parent=1 // pred_check_branch
      %1328 = sbr.rel (0) target = $region25
    $region24: #{tpu_custom_call.1} parent=1 // pred_region
      %1329 = dma.done [#allocation6], 16384
    $region25: #{tpu_custom_call.1} parent=1 // pred_fallthru
      _
    %1330 = vsyncpa [#allocation5], 1
    %1331 = vsyncpa [#allocation6], 1

</llo_original>
